<compile_context>
chip_gen: v5e
topology: v5e:2x2
jax: 0.10.0
libtpu: 0.0.40
codegen_flags: <defaults>
</compile_context>

<pallas_src>
import math
from functools import partial

import numpy as np
import jax
import jax.numpy as jnp
from jax.experimental import pallas as pl
from jax.experimental.pallas import tpu as pltpu


_SQRT_HALF = 1.0 / math.sqrt(2.0)
_TANH_C = math.sqrt(2.0 / math.pi)


def _cdiv(a, b):
    return -(-a // b)


def _round_up(a, m):
    return _cdiv(a, m) * m


def _gelu_exact(z):
    # torch.nn.GELU() default (approximate='none'): 0.5*z*(1+erf(z/sqrt(2)))
    return 0.5 * z * (1.0 + jax.lax.erf(z * _SQRT_HALF))


def _gelu_tanh(z):
    # tanh approximation (EUP-friendly).  Numerics differ from exact erf.
    return 0.5 * z * (1.0 + jnp.tanh(_TANH_C * (z + 0.044715 * z * z * z)))


# ----------------------------------------------------------------------------
# Kernel
# ----------------------------------------------------------------------------
def _gmlp_kernel(x_ref, w1_ref, b1_ref, w2_ref, b2_ref, o_ref, *, ph,
                 approx_gelu=False):
    # Per grid step (all lane-dense):
    #   x_ref  : (bm, P*C_in)
    #   w1_ref : (P*C_in, 2*P*hidden)   fused block-diag fc1 (u-half | z-half)
    #   b1_ref : (1, 2*P*hidden)
    #   w2_ref : (P*hidden, P*C_out),  b2_ref : (1, P*C_out)
    #   o_ref  : (bm, P*C_out)
    x = x_ref[...]                                        # native dtype -> MXU
    h = jnp.dot(x, w1_ref[...], preferred_element_type=jnp.float32)
    h = h + b1_ref[...].astype(jnp.float32)
    u = h[:, :ph]        # lane slice at a 128/256-aligned boundary -> free view
    z = h[:, ph:]
    act = _gelu_tanh(z) if approx_gelu else _gelu_exact(z)
    g = u * act                                           # elementwise in f32
    out = jnp.dot(g.astype(w2_ref.dtype), w2_ref[...],
                  preferred_element_type=jnp.float32)
    out = out + b2_ref[...].astype(jnp.float32)
    o_ref[...] = out.astype(o_ref.dtype)


# ----------------------------------------------------------------------------
# Hardware probing / packing helpers
# ----------------------------------------------------------------------------
def _tpu_arch():
    """(mxu_lane_target, tensorcores_per_chip, per-core vmem bytes)."""
    kind = ""
    try:
        kind = jax.devices()[0].device_kind.lower()
    except Exception:
        pass
    try:
        vmem = int(pltpu.get_tpu_info().vmem_capacity_bytes)
    except Exception:
        vmem = 64 * 2 ** 20          # conservative: v7x per-TensorCore VMEM
    old_gen = any(t in kind for t in ("v2", "v3", "v4", "v5"))
    mxu_width = 128 if old_gen else 256       # v6e/v7x: 256x256 MXU
    tc_per_chip = 2 if "v7" in kind else 1    # v7x: 2 TensorCores per chip
    return mxu_width, tc_per_chip, vmem


def _supports_buffered():
    if not hasattr(pl, "Buffered"):
        return False
    try:
        pl.BlockSpec((8, 128), lambda i: (0, 0), pipeline_mode=pl.Buffered(1))
        return True
    except TypeError:
        return False


_BUFFERED_FALLBACK_ERRORS = tuple(
    e for e in (TypeError, NotImplementedError,
                getattr(pltpu, "LoweringException", None)) if e is not None)


def _choose_pack(c_in, hidden, c_out, lane_target, itemsize,
                 max_weight_bytes=16 << 20):
    """Smallest token-packing factor P making every operand lane-dense for the
    MXU/lane width of this generation (256 on v6e/v7x, 128 on v5e), with a cap
    on the P^2-scaled block-diagonal weight expansion."""
    base_w = (c_in * 2 * hidden + hidden * c_out) * itemsize

    def ok(p, lanes):
        return ((p * c_in) % lanes == 0 and (p * hidden) % lanes == 0
                and (p * c_out) % lanes == 0)

    lane_opts = (lane_target, 128) if lane_target > 128 else (128,)
    for lanes in lane_opts:
        for p in (1, 2, 4, 8, 16):
            if ok(p, lanes) and p * p * base_w <= max_weight_bytes:
                return p
    return 1


def _block_diag(w, p):
    if p == 1:
        return w
    return jnp.kron(jnp.eye(p, dtype=w.dtype), w)


# ----------------------------------------------------------------------------
# Parameter preparation (hoisted: run once per weight set, not per forward)
# ----------------------------------------------------------------------------
def prepare_gmlp_params(w1, b1, w2, b2, *, lane_target=None):
    """w1: (C_in, 2*hidden) [already (in, out) layout], b1: (2*hidden,),
    w2: (hidden, C_out), b2: (C_out,)."""
    c_in, two_hidden = w1.shape
    hidden = two_hidden // 2
    c_out = w2.shape[1]
    if lane_target is None:
        lane_target, _, _ = _tpu_arch()
    itemsize = jnp.dtype(w1.dtype).itemsize
    p = _choose_pack(c_in, hidden, c_out, lane_target, itemsize)

    wu = _block_diag(w1[:, :hidden], p)                    # (P*C_in, P*hidden)
    wz = _block_diag(w1[:, hidden:], p)
    w1p = jnp.concatenate([wu, wz], axis=1)                # (P*C_in, 2*P*hidden)
    b1p = jnp.concatenate([jnp.tile(b1[:hidden], p),
                           jnp.tile(b1[hidden:], p)]).reshape(1, -1)
    w2p = _block_diag(w2, p)                               # (P*hidden, P*C_out)
    b2p = jnp.tile(b2, p).reshape(1, -1)

    return dict(w1=w1p, b1=b1p, w2=w2p, b2=b2p,
                pack=p, c_in=c_in, hidden=hidden, c_out=c_out)


# ----------------------------------------------------------------------------
# Forward wrapper
# ----------------------------------------------------------------------------
def gmlp_forward(x_nhwc, params, *, target_block_rows=4096, approx_gelu=False):
    """x_nhwc: (B,H,W,C_in) -> (B,H,W,C_out). Dropout(p=0.0) is identity."""
    B, H, W, c_in = x_nhwc.shape
    assert c_in == params["c_in"]
    P = params["pack"]
    hidden, c_out = params["hidden"], params["c_out"]
    pc_in, ph, pc_out = P * c_in, P * hidden, P * c_out

    dtype = x_nhwc.dtype
    itemsize = jnp.dtype(dtype).itemsize
    w_itemsize = jnp.dtype(params["w1"].dtype).itemsize

    N = B * H * W
    rows = _cdiv(N, P)                         # packed token-rows
    x_flat = x_nhwc.reshape(N, c_in)
    if rows * P != N:
        # Tiny pad only (< P token rows) so the lane-packing reshape is legal;
        # no full-array copy for block alignment (grid handles the ragged tail).
        x_flat = jnp.pad(x_flat, ((0, rows * P - N), (0, 0)))
    x_packed = x_flat.reshape(rows, pc_in)

    mxu_width, tc_per_chip, phys_vmem = _tpu_arch()
    usable_vmem = int(phys_vmem * 0.90)

    buffered_ok = _supports_buffered()
    weight_copies = 1 if buffered_ok else 2
    weight_bytes = weight_copies * int(
        (params["w1"].size + params["b1"].size
         + params["w2"].size + params["b2"].size) * w_itemsize)

    # Per-row VMEM: double-buffered x/out + f32 temporaries h (2*ph), g (ph)
    # and the f32 out slab (pc_out) -- all included (review fix).
    per_row = 2 * (pc_in + pc_out) * itemsize + (3 * ph + pc_out) * 4
    act_budget = max(usable_vmem - weight_bytes - (4 << 20), 2 << 20)
    max_rows_by_vmem = max(8, (act_budget // per_row) // 8 * 8)
    max_block = max(8, min(target_block_rows, max_rows_by_vmem) // 8 * 8)

    # Grid-step heuristic: >=4 steps on 2-TC (v7x) parts, >=2 on 1-TC parts,
    # but only if each step still moves >= ~2 MiB of activation I/O.
    io_per_row = (pc_in + pc_out) * itemsize
    min_step_rows = max(8, _round_up(_cdiv(2 << 20, io_per_row), 8))
    min_steps = 4 if tc_per_chip >= 2 else 2
    steps_for_vmem = _cdiv(rows, max_block)
    if rows >= min_steps * min_step_rows:
        desired_steps = max(steps_for_vmem, min_steps)
    else:
        desired_steps = steps_for_vmem
    block_rows = min(max_block, max(8, _round_up(_cdiv(rows, desired_steps), 8)))
    grid_m = _cdiv(rows, block_rows)

    needed = (2 * block_rows * (pc_in + pc_out) * itemsize
              + weight_bytes
              + block_rows * (3 * ph + pc_out) * 4)
    vmem_limit = int(min(max(int(needed * 1.25) + (2 << 20), 32 << 20),
                         usable_vmem))

    cost = pl.CostEstimate(
        flops=2 * N * c_in * 2 * hidden + 2 * N * hidden * c_out,
        transcendentals=N * hidden,
        bytes_accessed=int(N * (c_in + c_out) * itemsize
                           + (params["w1"].size + params["b1"].size
                              + params["w2"].size + params["b2"].size)
                           * w_itemsize))

    kernel = partial(_gmlp_kernel, ph=ph, approx_gelu=approx_gelu)

    def call(single_buffer_weights):
        if single_buffer_weights:
            def const_spec(shape):
                # Resident weights: constant index_map, single-buffered.
                return pl.BlockSpec(shape, lambda i: (0, 0),
                                    pipeline_mode=pl.Buffered(1))
        else:
            def const_spec(shape):
                return pl.BlockSpec(shape, lambda i: (0, 0))

        return pl.pallas_call(
            kernel,
            out_shape=jax.ShapeDtypeStruct((rows, pc_out), dtype),
            grid_spec=pltpu.PrefetchScalarGridSpec(
                num_scalar_prefetch=0,
                grid=(grid_m,),
                in_specs=[
                    pl.BlockSpec((block_rows, pc_in), lambda i: (i, 0)),
                    const_spec((pc_in, 2 * ph)),
                    const_spec((1, 2 * ph)),
                    const_spec((ph, pc_out)),
                    const_spec((1, pc_out)),
                ],
                out_specs=pl.BlockSpec((block_rows, pc_out), lambda i: (i, 0)),
            ),
            compiler_params=pltpu.CompilerParams(
                dimension_semantics=("parallel",),
                vmem_limit_bytes=vmem_limit),
            cost_estimate=cost,
        )(x_packed, params["w1"], params["b1"], params["w2"], params["b2"])

    if buffered_ok:
        try:
            out_packed = call(True)
        except _BUFFERED_FALLBACK_ERRORS:
            # Narrow fallback: only unsupported pipeline_mode / lowering of
            # Buffered(1); genuine compile/VMEM errors are NOT swallowed.
            out_packed = call(False)
    else:
        out_packed = call(False)

    out_flat = out_packed.reshape(rows * P, c_out)
    if rows * P != N:
        out_flat = out_flat[:N]
    return out_flat.reshape(B, H, W, c_out)


# ----------------------------------------------------------------------------
# Pure-JAX reference (matches the PyTorch forward)
# ----------------------------------------------------------------------------
def gmlp_reference(x_nhwc, w1, b1, w2, b2):
    h = jnp.einsum('bhwc,cd->bhwd', x_nhwc.astype(jnp.float32),
                   w1.astype(jnp.float32)) + b1.astype(jnp.float32)
    hidden = w1.shape[1] // 2
    u, z = h[..., :hidden], h[..., hidden:]
    g = u * _gelu_exact(z)
    out = jnp.einsum('bhwd,de->bhwe', g,
                     w2.astype(jnp.float32)) + b2.astype(jnp.float32)
    return out.astype(x_nhwc.dtype)


if __name__ == "__main__":
    # Small shapes consistent with the module defaults (out=in, hidden=in).
    B, H, W = 2, 8, 8
    C_in = hidden = C_out = 32

    key = jax.random.PRNGKey(0)
    k_x, k_w1, k_b1, k_w2, k_b2 = jax.random.split(key, 5)

    x = jax.random.normal(k_x, (B, H, W, C_in), dtype=jnp.float32)

    # nn.Linear params (weight stored already transposed to (in, out)).
    bound1 = 1.0 / math.sqrt(C_in)
    w1 = jax.random.uniform(k_w1, (C_in, 2 * hidden), minval=-bound1,
                            maxval=bound1, dtype=jnp.float32)
    b1 = jax.random.uniform(k_b1, (2 * hidden,), minval=-bound1,
                            maxval=bound1, dtype=jnp.float32)
    bound2 = 1.0 / math.sqrt(hidden)
    w2 = jax.random.uniform(k_w2, (hidden, C_out), minval=-bound2,
                            maxval=bound2, dtype=jnp.float32)
    b2 = jax.random.uniform(k_b2, (C_out,), minval=-bound2,
                            maxval=bound2, dtype=jnp.float32)

    # Weight expansion hoisted out of the per-call path (done once here).
    params = prepare_gmlp_params(w1, b1, w2, b2)

    out = jax.block_until_ready(gmlp_forward(x, params))
    ref = jax.block_until_ready(gmlp_reference(x, w1, b1, w2, b2))
    np.testing.assert_allclose(np.asarray(out), np.asarray(ref),
                               rtol=1e-5, atol=1e-5)

    # TODO(synk): nn.Dropout with p>0 (training mode) would need an RNG mask;
    # p=0.0 (the module default) is an identity and is what is implemented.
    print("KERNEL_OK")
</pallas_src>

<mosaic_0001>
module attributes {stable_mosaic.version = 11 : i64} {
  func.func @_gmlp_kernel(%arg0: i32, %arg1: memref<16x256xf32, #tpu.memory_space<vmem>>, %arg2: memref<256x512xf32, #tpu.memory_space<vmem>>, %arg3: memref<1x512xf32, #tpu.memory_space<vmem>>, %arg4: memref<256x256xf32, #tpu.memory_space<vmem>>, %arg5: memref<1x256xf32, #tpu.memory_space<vmem>>, %arg6: memref<16x256xf32, #tpu.memory_space<vmem>>) attributes {dimension_semantics = [#tpu.dimension_semantics<parallel>], iteration_bounds = array<i64: 1>, scalar_prefetch = 0 : i64, scratch_operands = 0 : i64, tpu.core_type = #tpu.core_type<tc>, window_params = [{transform_indices = @transform_0, window_bounds = array<i64: 16, 256>}, {pipeline_mode = #tpu.pipeline_mode<synchronous>, transform_indices = @transform_1, window_bounds = array<i64: 256, 512>}, {pipeline_mode = #tpu.pipeline_mode<synchronous>, transform_indices = @transform_2, window_bounds = array<i64: 1, 512>}, {pipeline_mode = #tpu.pipeline_mode<synchronous>, transform_indices = @transform_3, window_bounds = array<i64: 256, 256>}, {pipeline_mode = #tpu.pipeline_mode<synchronous>, transform_indices = @transform_4, window_bounds = array<i64: 1, 256>}, {transform_indices = @transform_5, window_bounds = array<i64: 16, 256>}]} {
    %c0 = arith.constant 0 : index
    %c0_0 = arith.constant 0 : index
    %0 = vector.load %arg1[%c0, %c0_0] : memref<16x256xf32, #tpu.memory_space<vmem>>, vector<16x256xf32>
    %c0_1 = arith.constant 0 : index
    %c0_2 = arith.constant 0 : index
    %1 = vector.load %arg2[%c0_1, %c0_2] : memref<256x512xf32, #tpu.memory_space<vmem>>, vector<256x512xf32>
    %cst = arith.constant dense<0.000000e+00> : vector<16x512xf32>
    %2 = tpu.matmul %0, %1, %cst {dimension_numbers = #tpu.dot_dimension_numbers<[1], [0], [0], [1], [0, 0, 1, 1], [], []>} : vector<16x256xf32>, vector<256x512xf32>, vector<16x512xf32> -> vector<16x512xf32>
    %c0_3 = arith.constant 0 : index
    %c0_4 = arith.constant 0 : index
    %3 = vector.load %arg3[%c0_3, %c0_4] : memref<1x512xf32, #tpu.memory_space<vmem>>, vector<1x512xf32>
    %4 = vector.broadcast %3 : vector<1x512xf32> to vector<16x512xf32>
    %5 = arith.addf %2, %4 : vector<16x512xf32>
    %6 = vector.extract_strided_slice %5 {offsets = [0, 0], sizes = [16, 256], strides = [1, 1]} : vector<16x512xf32> to vector<16x256xf32>
    %7 = vector.extract_strided_slice %5 {offsets = [0, 256], sizes = [16, 256], strides = [1, 1]} : vector<16x512xf32> to vector<16x256xf32>
    %cst_5 = arith.constant 5.000000e-01 : f32
    %8 = vector.broadcast %cst_5 : f32 to vector<16x256xf32>
    %9 = arith.mulf %8, %7 : vector<16x256xf32>
    %cst_6 = arith.constant 0.707106769 : f32
    %10 = vector.broadcast %cst_6 : f32 to vector<16x256xf32>
    %11 = arith.mulf %7, %10 : vector<16x256xf32>
    %12 = math.erf %11 : vector<16x256xf32>
    %cst_7 = arith.constant 1.000000e+00 : f32
    %13 = vector.broadcast %cst_7 : f32 to vector<16x256xf32>
    %14 = arith.addf %13, %12 : vector<16x256xf32>
    %15 = arith.mulf %9, %14 : vector<16x256xf32>
    %16 = arith.mulf %6, %15 : vector<16x256xf32>
    %c0_8 = arith.constant 0 : index
    %c0_9 = arith.constant 0 : index
    %17 = vector.load %arg4[%c0_8, %c0_9] : memref<256x256xf32, #tpu.memory_space<vmem>>, vector<256x256xf32>
    %cst_10 = arith.constant dense<0.000000e+00> : vector<16x256xf32>
    %18 = tpu.matmul %16, %17, %cst_10 {dimension_numbers = #tpu.dot_dimension_numbers<[1], [0], [0], [1], [0, 0, 1, 1], [], []>} : vector<16x256xf32>, vector<256x256xf32>, vector<16x256xf32> -> vector<16x256xf32>
    %c0_11 = arith.constant 0 : index
    %c0_12 = arith.constant 0 : index
    %19 = vector.load %arg5[%c0_11, %c0_12] : memref<1x256xf32, #tpu.memory_space<vmem>>, vector<1x256xf32>
    %20 = vector.broadcast %19 : vector<1x256xf32> to vector<16x256xf32>
    %21 = arith.addf %18, %20 : vector<16x256xf32>
    %c0_13 = arith.constant 0 : index
    %c0_14 = arith.constant 0 : index
    %22 = vector.load %arg6[%c0_13, %c0_14] : memref<16x256xf32, #tpu.memory_space<vmem>>, vector<16x256xf32>
    tpu.vector_store %arg6[%c0_13, %c0_14], %21 {strides = array<i32>} : memref<16x256xf32, #tpu.memory_space<vmem>>, vector<16x256xf32>,
    return
  }
  func.func @transform_0(%arg0: i32) -> (i32, i32) {
    %c0_i32 = arith.constant 0 : i32
    %c0_i32_0 = arith.constant 0 : i32
    return %arg0, %c0_i32 : i32, i32
  }
  func.func @transform_1(%arg0: i32) -> (i32, i32) {
    %c0_i32 = arith.constant 0 : i32
    %c0_i32_0 = arith.constant 0 : i32
    %c0_i32_1 = arith.constant 0 : i32
    return %c0_i32, %c0_i32_0 : i32, i32
  }
  func.func @transform_2(%arg0: i32) -> (i32, i32) {
    %c0_i32 = arith.constant 0 : i32
    %c0_i32_0 = arith.constant 0 : i32
    %c0_i32_1 = arith.constant 0 : i32
    return %c0_i32, %c0_i32_0 : i32, i32
  }
  func.func @transform_3(%arg0: i32) -> (i32, i32) {
    %c0_i32 = arith.constant 0 : i32
    %c0_i32_0 = arith.constant 0 : i32
    %c0_i32_1 = arith.constant 0 : i32
    return %c0_i32, %c0_i32_0 : i32, i32
  }
  func.func @transform_4(%arg0: i32) -> (i32, i32) {
    %c0_i32 = arith.constant 0 : i32
    %c0_i32_0 = arith.constant 0 : i32
    %c0_i32_1 = arith.constant 0 : i32
    return %c0_i32, %c0_i32_0 : i32, i32
  }
  func.func @transform_5(%arg0: i32) -> (i32, i32) {
    %c0_i32 = arith.constant 0 : i32
    %c0_i32_0 = arith.constant 0 : i32
    return %arg0, %c0_i32 : i32, i32
  }
}

</mosaic_0001>

<llo_original>
// kernel: tpu_custom_call.1
$region0: #{tpu_custom_call.1}
  #allocation0 [shape = 'u32[]', space=smem, size = 0x4, offset = 0x4, fixed_abs, tag = 'smem constant byte address 0x4 - core index']
  #allocation1 [shape = 'u32[72,128]{1,0:T(1,128)}', space=vmem, size = 0x9000, scoped, tag = 'internal scratch']
  %s0 = inlined_call_operand.hbm [shape: f32[16,256], index: 0, kind: input, shape index: {}]
  %s1 = inlined_call_operand.hbm [shape: f32[256,512], index: 1, kind: input, shape index: {}]
  %s2 = inlined_call_operand.hbm [shape: f32[1,512], index: 2, kind: input, shape index: {}]
  %s3 = inlined_call_operand.hbm [shape: f32[256,256], index: 3, kind: input, shape index: {}]
  %s4 = inlined_call_operand.vmem [shape: f32[1,256], index: 4, kind: input, shape index: {}]
  %s5 = inlined_call_operand.hbm [shape: f32[16,256], index: 5, kind: output, shape index: {}]
  %s6 = sld [smem:[#allocation0]]
  $region46: #{tpu_custom_call.1} parent=0
    _
  %s8 = ssub.s32 1, %s6
  %s9 = scalar_select 0, %s8, %s6
  $region1: #{tpu_custom_call.1} parent=0
    #allocation2 [shape = 'u8[16384]{0}', space=vmem, size = 0x4000, scoped, tag = 'input window, operand 0, single buffered']
    #allocation3 [shape = 's32[1]{0}', space=sflag, size = 0x4, scoped, tag = 'scoped memory for tpu_custom_call.1']
    #allocation4 [shape = 's32[1]{0}', space=sflag, size = 0x4, scoped, tag = 'scoped memory for tpu_custom_call.1']
    #allocation5 [shape = 'u8[524288]{0}', space=vmem, size = 0x80000, scoped, tag = 'input window, operand 1, single buffered']
    #allocation6 [shape = 's32[1]{0}', space=sflag, size = 0x4, scoped, tag = 'scoped memory for tpu_custom_call.1']
    #allocation7 [shape = 'u8[2048]{0}', space=vmem, size = 0x800, scoped, tag = 'input window, operand 2, single buffered']
    #allocation8 [shape = 'u8[262144]{0}', space=vmem, size = 0x40000, scoped, tag = 'input window, operand 3, single buffered']
    #allocation9 [shape = 's32[1]{0}', space=sflag, size = 0x4, scoped, tag = 'scoped memory for tpu_custom_call.1']
    #allocation10 [shape = 'u8[16384]{0}', space=vmem, size = 0x4000, scoped, tag = 'output window, operand 0, single buffered']
    %10 = vsyncpa [#allocation3], 0
    %11 = vsyncpa [#allocation6], 0
    %12 = vsyncpa [#allocation9], 0
    %13 = vsyncpa [#allocation4], 0
    // Predicated region
    $region2: #{tpu_custom_call.1} parent=1 // pred_check
      _
    $region3: #{tpu_custom_call.1} parent=1 // pred_check_branch
      %15 = sbr.rel (0) target = $region5
    $region4: #{tpu_custom_call.1} parent=1 // pred_region
      %17 = vsyncadd [#allocation3], 0
      %s18 = sshll.u32 %s0, 4
      %s19 = int_to_ptr.hbm [resolvable:$true] %s18
      %s20 = sshll.u32 [#allocation2], 4
      %s21 = int_to_ptr.vmem [resolvable:$true] %s20
      %26 = dma.hbm_to_vmem [thread:$0]  %s19, 512, %s21, [#allocation3], 256, 256, 16
    $region5: #{tpu_custom_call.1} parent=1 // pred_fallthru
      _
    // Predicated region
    $region6: #{tpu_custom_call.1} parent=1 // pred_check
      _
    $region7: #{tpu_custom_call.1} parent=1 // pred_check_branch
      %28 = sbr.rel (0) target = $region9
    $region8: #{tpu_custom_call.1} parent=1 // pred_region
      %30 = vsyncadd [#allocation6], 0
      %s31 = sshll.u32 %s1, 4
      %s32 = int_to_ptr.hbm [resolvable:$true] %s31
      %s33 = sshll.u32 [#allocation5], 4
      %s34 = int_to_ptr.vmem [resolvable:$true] %s33
      %39 = dma.hbm_to_vmem [thread:$0]  %s32, 16384, %s34, [#allocation6], 512, 512, 32
    $region9: #{tpu_custom_call.1} parent=1 // pred_fallthru
      _
    // Predicated region
    $region10: #{tpu_custom_call.1} parent=1 // pred_check
      _
    $region11: #{tpu_custom_call.1} parent=1 // pred_check_branch
      %41 = sbr.rel (0) target = $region13
    $region12: #{tpu_custom_call.1} parent=1 // pred_region
      %43 = vsyncadd [#allocation6], 0
      %s45 = sshll.u32 %s2, 4
      %s46 = int_to_ptr.hbm [resolvable:$true] %s45
      %s47 = sshll.u32 [#allocation7], 4
      %s48 = int_to_ptr.vmem [resolvable:$true] %s47
      %50 = dma.hbm_to_vmem [thread:$0]  %s46, 64, %s48, [#allocation6]
    $region13: #{tpu_custom_call.1} parent=1 // pred_fallthru
      _
    // Predicated region
    $region14: #{tpu_custom_call.1} parent=1 // pred_check
      _
    $region15: #{tpu_custom_call.1} parent=1 // pred_check_branch
      %52 = sbr.rel (0) target = $region17
    $region16: #{tpu_custom_call.1} parent=1 // pred_region
      %54 = vsyncadd [#allocation9], 0
      %s55 = sshll.u32 %s3, 4
      %s56 = int_to_ptr.hbm [resolvable:$true] %s55
      %s57 = sshll.u32 [#allocation8], 4
      %s58 = int_to_ptr.vmem [resolvable:$true] %s57
      %63 = dma.hbm_to_vmem [thread:$0]  %s56, 8192, %s58, [#allocation9], 256, 256, 16
    $region17: #{tpu_custom_call.1} parent=1 // pred_fallthru
      _
    // Predicated region
    $region18: #{tpu_custom_call.1} parent=1 // pred_check
      _
    $region19: #{tpu_custom_call.1} parent=1 // pred_check_branch
      %65 = sbr.rel (0) target = $region21
    $region20: #{tpu_custom_call.1} parent=1 // pred_region
      _
    $region21: #{tpu_custom_call.1} parent=1 // pred_fallthru
      _
    // Predicated region
    $region22: #{tpu_custom_call.1} parent=1 // pred_check
      _
    $region23: #{tpu_custom_call.1} parent=1 // pred_check_branch
      %67 = sbr.rel (0) target = $region25
    $region24: #{tpu_custom_call.1} parent=1 // pred_region
      %69 = dma.done [#allocation3], 512
    $region25: #{tpu_custom_call.1} parent=1 // pred_fallthru
      _
    // Predicated region
    $region26: #{tpu_custom_call.1} parent=1 // pred_check
      _
    $region27: #{tpu_custom_call.1} parent=1 // pred_check_branch
      %71 = sbr.rel (0) target = $region29
    $region28: #{tpu_custom_call.1} parent=1 // pred_region
      %73 = dma.done [#allocation6], 16384
    $region29: #{tpu_custom_call.1} parent=1 // pred_fallthru
      _
    // Predicated region
    $region30: #{tpu_custom_call.1} parent=1 // pred_check
      _
    $region31: #{tpu_custom_call.1} parent=1 // pred_check_branch
      %75 = sbr.rel (0) target = $region33
    $region32: #{tpu_custom_call.1} parent=1 // pred_region
      %77 = dma.done [#allocation6], 64
    $region33: #{tpu_custom_call.1} parent=1 // pred_fallthru
      _
    // Predicated region
    $region34: #{tpu_custom_call.1} parent=1 // pred_check
      _
    $region35: #{tpu_custom_call.1} parent=1 // pred_check_branch
      %79 = sbr.rel (0) target = $region37
    $region36: #{tpu_custom_call.1} parent=1 // pred_region
      %81 = dma.done [#allocation9], 8192
    $region37: #{tpu_custom_call.1} parent=1 // pred_fallthru
      _
    %v82 = vld [vmem:[#allocation2] sm:$0xff]
    %v83 = vld [vmem:[#allocation2 + $0x8] sm:$0xff]
    %v84 = vld [vmem:[#allocation2 + $0x10] sm:$0xff]
    %v85 = vld [vmem:[#allocation2 + $0x18] sm:$0xff]
    %v86 = vld [vmem:[#allocation5] sm:$0xff]
    %v87 = vld [vmem:[#allocation5 + $0x8] sm:$0xff]
    %v88 = vld [vmem:[#allocation5 + $0x10] sm:$0xff]
    %v89 = vld [vmem:[#allocation5 + $0x18] sm:$0xff]
    %v90 = vld [vmem:[#allocation5 + $0x20] sm:$0xff]
    %v91 = vld [vmem:[#allocation5 + $0x28] sm:$0xff]
    %v92 = vld [vmem:[#allocation5 + $0x30] sm:$0xff]
    %v93 = vld [vmem:[#allocation5 + $0x38] sm:$0xff]
    %v94 = vld [vmem:[#allocation5 + $0x40] sm:$0xff]
    %v95 = vld [vmem:[#allocation5 + $0x48] sm:$0xff]
    %v96 = vld [vmem:[#allocation5 + $0x50] sm:$0xff]
    %v97 = vld [vmem:[#allocation5 + $0x58] sm:$0xff]
    %v98 = vld [vmem:[#allocation5 + $0x60] sm:$0xff]
    %v99 = vld [vmem:[#allocation5 + $0x68] sm:$0xff]
    %v100 = vld [vmem:[#allocation5 + $0x70] sm:$0xff]
    %v101 = vld [vmem:[#allocation5 + $0x78] sm:$0xff]
    %v102 = vld [vmem:[#allocation5 + $0x80] sm:$0xff]
    %v103 = vld [vmem:[#allocation5 + $0x88] sm:$0xff]
    %v104 = vld [vmem:[#allocation5 + $0x90] sm:$0xff]
    %v105 = vld [vmem:[#allocation5 + $0x98] sm:$0xff]
    %v106 = vld [vmem:[#allocation5 + $0xa0] sm:$0xff]
    %v107 = vld [vmem:[#allocation5 + $0xa8] sm:$0xff]
    %v108 = vld [vmem:[#allocation5 + $0xb0] sm:$0xff]
    %v109 = vld [vmem:[#allocation5 + $0xb8] sm:$0xff]
    %v110 = vld [vmem:[#allocation5 + $0xc0] sm:$0xff]
    %v111 = vld [vmem:[#allocation5 + $0xc8] sm:$0xff]
    %v112 = vld [vmem:[#allocation5 + $0xd0] sm:$0xff]
    %v113 = vld [vmem:[#allocation5 + $0xd8] sm:$0xff]
    %v114 = vld [vmem:[#allocation5 + $0xe0] sm:$0xff]
    %v115 = vld [vmem:[#allocation5 + $0xe8] sm:$0xff]
    %v116 = vld [vmem:[#allocation5 + $0xf0] sm:$0xff]
    %v117 = vld [vmem:[#allocation5 + $0xf8] sm:$0xff]
    %v118 = vld [vmem:[#allocation5 + $0x100] sm:$0xff]
    %v119 = vld [vmem:[#allocation5 + $0x108] sm:$0xff]
    %v120 = vld [vmem:[#allocation5 + $0x110] sm:$0xff]
    %v121 = vld [vmem:[#allocation5 + $0x118] sm:$0xff]
    %v122 = vld [vmem:[#allocation5 + $0x120] sm:$0xff]
    %v123 = vld [vmem:[#allocation5 + $0x128] sm:$0xff]
    %v124 = vld [vmem:[#allocation5 + $0x130] sm:$0xff]
    %v125 = vld [vmem:[#allocation5 + $0x138] sm:$0xff]
    %v126 = vld [vmem:[#allocation5 + $0x140] sm:$0xff]
    %v127 = vld [vmem:[#allocation5 + $0x148] sm:$0xff]
    %v128 = vld [vmem:[#allocation5 + $0x150] sm:$0xff]
    %v129 = vld [vmem:[#allocation5 + $0x158] sm:$0xff]
    %v130 = vld [vmem:[#allocation5 + $0x160] sm:$0xff]
    %v131 = vld [vmem:[#allocation5 + $0x168] sm:$0xff]
    %v132 = vld [vmem:[#allocation5 + $0x170] sm:$0xff]
    %v133 = vld [vmem:[#allocation5 + $0x178] sm:$0xff]
    %v134 = vld [vmem:[#allocation5 + $0x180] sm:$0xff]
    %v135 = vld [vmem:[#allocation5 + $0x188] sm:$0xff]
    %v136 = vld [vmem:[#allocation5 + $0x190] sm:$0xff]
    %v137 = vld [vmem:[#allocation5 + $0x198] sm:$0xff]
    %v138 = vld [vmem:[#allocation5 + $0x1a0] sm:$0xff]
    %v139 = vld [vmem:[#allocation5 + $0x1a8] sm:$0xff]
    %v140 = vld [vmem:[#allocation5 + $0x1b0] sm:$0xff]
    %v141 = vld [vmem:[#allocation5 + $0x1b8] sm:$0xff]
    %v142 = vld [vmem:[#allocation5 + $0x1c0] sm:$0xff]
    %v143 = vld [vmem:[#allocation5 + $0x1c8] sm:$0xff]
    %v144 = vld [vmem:[#allocation5 + $0x1d0] sm:$0xff]
    %v145 = vld [vmem:[#allocation5 + $0x1d8] sm:$0xff]
    %v146 = vld [vmem:[#allocation5 + $0x1e0] sm:$0xff]
    %v147 = vld [vmem:[#allocation5 + $0x1e8] sm:$0xff]
    %v148 = vld [vmem:[#allocation5 + $0x1f0] sm:$0xff]
    %v149 = vld [vmem:[#allocation5 + $0x1f8] sm:$0xff]
    %v150 = vld [vmem:[#allocation5 + $0x200] sm:$0xff]
    %v151 = vld [vmem:[#allocation5 + $0x208] sm:$0xff]
    %v152 = vld [vmem:[#allocation5 + $0x210] sm:$0xff]
    %v153 = vld [vmem:[#allocation5 + $0x218] sm:$0xff]
    %v154 = vld [vmem:[#allocation5 + $0x220] sm:$0xff]
    %v155 = vld [vmem:[#allocation5 + $0x228] sm:$0xff]
    %v156 = vld [vmem:[#allocation5 + $0x230] sm:$0xff]
    %v157 = vld [vmem:[#allocation5 + $0x238] sm:$0xff]
    %v158 = vld [vmem:[#allocation5 + $0x240] sm:$0xff]
    %v159 = vld [vmem:[#allocation5 + $0x248] sm:$0xff]
    %v160 = vld [vmem:[#allocation5 + $0x250] sm:$0xff]
    %v161 = vld [vmem:[#allocation5 + $0x258] sm:$0xff]
    %v162 = vld [vmem:[#allocation5 + $0x260] sm:$0xff]
    %v163 = vld [vmem:[#allocation5 + $0x268] sm:$0xff]
    %v164 = vld [vmem:[#allocation5 + $0x270] sm:$0xff]
    %v165 = vld [vmem:[#allocation5 + $0x278] sm:$0xff]
    %v166 = vld [vmem:[#allocation5 + $0x280] sm:$0xff]
    %v167 = vld [vmem:[#allocation5 + $0x288] sm:$0xff]
    %v168 = vld [vmem:[#allocation5 + $0x290] sm:$0xff]
    %v169 = vld [vmem:[#allocation5 + $0x298] sm:$0xff]
    %v170 = vld [vmem:[#allocation5 + $0x2a0] sm:$0xff]
    %v171 = vld [vmem:[#allocation5 + $0x2a8] sm:$0xff]
    %v172 = vld [vmem:[#allocation5 + $0x2b0] sm:$0xff]
    %v173 = vld [vmem:[#allocation5 + $0x2b8] sm:$0xff]
    %v174 = vld [vmem:[#allocation5 + $0x2c0] sm:$0xff]
    %v175 = vld [vmem:[#allocation5 + $0x2c8] sm:$0xff]
    %v176 = vld [vmem:[#allocation5 + $0x2d0] sm:$0xff]
    %v177 = vld [vmem:[#allocation5 + $0x2d8] sm:$0xff]
    %v178 = vld [vmem:[#allocation5 + $0x2e0] sm:$0xff]
    %v179 = vld [vmem:[#allocation5 + $0x2e8] sm:$0xff]
    %v180 = vld [vmem:[#allocation5 + $0x2f0] sm:$0xff]
    %v181 = vld [vmem:[#allocation5 + $0x2f8] sm:$0xff]
    %v182 = vld [vmem:[#allocation5 + $0x300] sm:$0xff]
    %v183 = vld [vmem:[#allocation5 + $0x308] sm:$0xff]
    %v184 = vld [vmem:[#allocation5 + $0x310] sm:$0xff]
    %v185 = vld [vmem:[#allocation5 + $0x318] sm:$0xff]
    %v186 = vld [vmem:[#allocation5 + $0x320] sm:$0xff]
    %v187 = vld [vmem:[#allocation5 + $0x328] sm:$0xff]
    %v188 = vld [vmem:[#allocation5 + $0x330] sm:$0xff]
    %v189 = vld [vmem:[#allocation5 + $0x338] sm:$0xff]
    %v190 = vld [vmem:[#allocation5 + $0x340] sm:$0xff]
    %v191 = vld [vmem:[#allocation5 + $0x348] sm:$0xff]
    %v192 = vld [vmem:[#allocation5 + $0x350] sm:$0xff]
    %v193 = vld [vmem:[#allocation5 + $0x358] sm:$0xff]
    %v194 = vld [vmem:[#allocation5 + $0x360] sm:$0xff]
    %v195 = vld [vmem:[#allocation5 + $0x368] sm:$0xff]
    %v196 = vld [vmem:[#allocation5 + $0x370] sm:$0xff]
    %v197 = vld [vmem:[#allocation5 + $0x378] sm:$0xff]
    %v198 = vld [vmem:[#allocation5 + $0x380] sm:$0xff]
    %v199 = vld [vmem:[#allocation5 + $0x388] sm:$0xff]
    %v200 = vld [vmem:[#allocation5 + $0x390] sm:$0xff]
    %v201 = vld [vmem:[#allocation5 + $0x398] sm:$0xff]
    %v202 = vld [vmem:[#allocation5 + $0x3a0] sm:$0xff]
    %v203 = vld [vmem:[#allocation5 + $0x3a8] sm:$0xff]
    %v204 = vld [vmem:[#allocation5 + $0x3b0] sm:$0xff]
    %v205 = vld [vmem:[#allocation5 + $0x3b8] sm:$0xff]
    %v206 = vld [vmem:[#allocation5 + $0x3c0] sm:$0xff]
    %v207 = vld [vmem:[#allocation5 + $0x3c8] sm:$0xff]
    %v208 = vld [vmem:[#allocation5 + $0x3d0] sm:$0xff]
    %v209 = vld [vmem:[#allocation5 + $0x3d8] sm:$0xff]
    %v210 = vld [vmem:[#allocation5 + $0x3e0] sm:$0xff]
    %v211 = vld [vmem:[#allocation5 + $0x3e8] sm:$0xff]
    %v212 = vld [vmem:[#allocation5 + $0x3f0] sm:$0xff]
    %v213 = vld [vmem:[#allocation5 + $0x3f8] sm:$0xff]
    %v214 = vld [vmem:[#allocation7] sm:$0xf]
    %v216 = vperm.slane %v214, 0
    %v217 = vperm.slane %v214, 1
    %v218 = vperm.slane %v214, 2
    %v219 = vperm.slane %v214, 3
    %224 = vmatpush.msra.mxu0 %v146
    %225 = vmatpush.msra.mxu0 %v142
    %226 = vmatpush.msra.mxu0 %v138
    %227 = vmatpush.msra.mxu0 %v134
    %228 = vmatpush.msra.mxu0 %v130
    %229 = vmatpush.msra.mxu0 %v126
    %230 = vmatpush.msra.mxu0 %v122
    %231 = vmatpush.msra.mxu0 %v118
    %232 = vmatpush.msra.mxu0 %v114
    %233 = vmatpush.msra.mxu0 %v110
    %234 = vmatpush.msra.mxu0 %v106
    %235 = vmatpush.msra.mxu0 %v102
    %236 = vmatpush.msra.mxu0 %v98
    %237 = vmatpush.msra.mxu0 %v94
    %238 = vmatpush.msra.mxu0 %v90
    %239 = vmatpush.msra.mxu0 %v86
    %240 = vmatmul.f32.gmra.mxu0 %v82
    %v241 = vpop.f32.mrf.mxu0
    %v242 = vadd.f32 %v216, %v241
    %243 = vmatmul.f32.gmra.mxu0 %v84
    %v244 = vpop.f32.mrf.mxu0
    %v245 = vadd.f32 %v216, %v244
    %246 = vdwg.mxu0
    %247 = vmatpush.msra.mxu0 %v210
    %248 = vmatpush.msra.mxu0 %v206
    %249 = vmatpush.msra.mxu0 %v202
    %250 = vmatpush.msra.mxu0 %v198
    %251 = vmatpush.msra.mxu0 %v194
    %252 = vmatpush.msra.mxu0 %v190
    %253 = vmatpush.msra.mxu0 %v186
    %254 = vmatpush.msra.mxu0 %v182
    %255 = vmatpush.msra.mxu0 %v178
    %256 = vmatpush.msra.mxu0 %v174
    %257 = vmatpush.msra.mxu0 %v170
    %258 = vmatpush.msra.mxu0 %v166
    %259 = vmatpush.msra.mxu0 %v162
    %260 = vmatpush.msra.mxu0 %v158
    %261 = vmatpush.msra.mxu0 %v154
    %262 = vmatpush.msra.mxu0 %v150
    %263 = vmatmul.f32.gmra.mxu0 %v83
    %v264 = vpop.f32.mrf.mxu0
    %v265 = vadd.f32 %v242, %v264
    %266 = vmatmul.f32.gmra.mxu0 %v85
    %v267 = vpop.f32.mrf.mxu0
    %v268 = vadd.f32 %v245, %v267
    %269 = vdwg.mxu0
    %270 = vmatpush.msra.mxu0 %v147
    %271 = vmatpush.msra.mxu0 %v143
    %272 = vmatpush.msra.mxu0 %v139
    %273 = vmatpush.msra.mxu0 %v135
    %274 = vmatpush.msra.mxu0 %v131
    %275 = vmatpush.msra.mxu0 %v127
    %276 = vmatpush.msra.mxu0 %v123
    %277 = vmatpush.msra.mxu0 %v119
    %278 = vmatpush.msra.mxu0 %v115
    %279 = vmatpush.msra.mxu0 %v111
    %280 = vmatpush.msra.mxu0 %v107
    %281 = vmatpush.msra.mxu0 %v103
    %282 = vmatpush.msra.mxu0 %v99
    %283 = vmatpush.msra.mxu0 %v95
    %284 = vmatpush.msra.mxu0 %v91
    %285 = vmatpush.msra.mxu0 %v87
    %286 = vmatmul.f32.gmra.mxu0 %v82
    %v287 = vpop.f32.mrf.mxu0
    %v288 = vadd.f32 %v217, %v287
    %289 = vmatmul.f32.gmra.mxu0 %v84
    %v290 = vpop.f32.mrf.mxu0
    %v291 = vadd.f32 %v217, %v290
    %292 = vdwg.mxu0
    %293 = vmatpush.msra.mxu0 %v211
    %294 = vmatpush.msra.mxu0 %v207
    %295 = vmatpush.msra.mxu0 %v203
    %296 = vmatpush.msra.mxu0 %v199
    %297 = vmatpush.msra.mxu0 %v195
    %298 = vmatpush.msra.mxu0 %v191
    %299 = vmatpush.msra.mxu0 %v187
    %300 = vmatpush.msra.mxu0 %v183
    %301 = vmatpush.msra.mxu0 %v179
    %302 = vmatpush.msra.mxu0 %v175
    %303 = vmatpush.msra.mxu0 %v171
    %304 = vmatpush.msra.mxu0 %v167
    %305 = vmatpush.msra.mxu0 %v163
    %306 = vmatpush.msra.mxu0 %v159
    %307 = vmatpush.msra.mxu0 %v155
    %308 = vmatpush.msra.mxu0 %v151
    %309 = vmatmul.f32.gmra.mxu0 %v83
    %v310 = vpop.f32.mrf.mxu0
    %v311 = vadd.f32 %v288, %v310
    %312 = vmatmul.f32.gmra.mxu0 %v85
    %v313 = vpop.f32.mrf.mxu0
    %v314 = vadd.f32 %v291, %v313
    %315 = vdwg.mxu0
    %316 = vmatpush.msra.mxu0 %v148
    %317 = vmatpush.msra.mxu0 %v144
    %318 = vmatpush.msra.mxu0 %v140
    %319 = vmatpush.msra.mxu0 %v136
    %320 = vmatpush.msra.mxu0 %v132
    %321 = vmatpush.msra.mxu0 %v128
    %322 = vmatpush.msra.mxu0 %v124
    %323 = vmatpush.msra.mxu0 %v120
    %324 = vmatpush.msra.mxu0 %v116
    %325 = vmatpush.msra.mxu0 %v112
    %326 = vmatpush.msra.mxu0 %v108
    %327 = vmatpush.msra.mxu0 %v104
    %328 = vmatpush.msra.mxu0 %v100
    %329 = vmatpush.msra.mxu0 %v96
    %330 = vmatpush.msra.mxu0 %v92
    %331 = vmatpush.msra.mxu0 %v88
    %332 = vmatmul.f32.gmra.mxu0 %v82
    %v333 = vpop.f32.mrf.mxu0
    %v334 = vadd.f32 %v218, %v333
    %335 = vmatmul.f32.gmra.mxu0 %v84
    %v336 = vpop.f32.mrf.mxu0
    %v337 = vadd.f32 %v218, %v336
    %338 = vdwg.mxu0
    %339 = vmatpush.msra.mxu0 %v212
    %340 = vmatpush.msra.mxu0 %v208
    %341 = vmatpush.msra.mxu0 %v204
    %342 = vmatpush.msra.mxu0 %v200
    %343 = vmatpush.msra.mxu0 %v196
    %344 = vmatpush.msra.mxu0 %v192
    %345 = vmatpush.msra.mxu0 %v188
    %346 = vmatpush.msra.mxu0 %v184
    %347 = vmatpush.msra.mxu0 %v180
    %348 = vmatpush.msra.mxu0 %v176
    %349 = vmatpush.msra.mxu0 %v172
    %350 = vmatpush.msra.mxu0 %v168
    %351 = vmatpush.msra.mxu0 %v164
    %352 = vmatpush.msra.mxu0 %v160
    %353 = vmatpush.msra.mxu0 %v156
    %354 = vmatpush.msra.mxu0 %v152
    %355 = vmatmul.f32.gmra.mxu0 %v83
    %v356 = vpop.f32.mrf.mxu0
    %v357 = vadd.f32 %v334, %v356
    %358 = vmatmul.f32.gmra.mxu0 %v85
    %v359 = vpop.f32.mrf.mxu0
    %v360 = vadd.f32 %v337, %v359
    %361 = vdwg.mxu0
    %362 = vmatpush.msra.mxu0 %v149
    %363 = vmatpush.msra.mxu0 %v145
    %364 = vmatpush.msra.mxu0 %v141
    %365 = vmatpush.msra.mxu0 %v137
    %366 = vmatpush.msra.mxu0 %v133
    %367 = vmatpush.msra.mxu0 %v129
    %368 = vmatpush.msra.mxu0 %v125
    %369 = vmatpush.msra.mxu0 %v121
    %370 = vmatpush.msra.mxu0 %v117
    %371 = vmatpush.msra.mxu0 %v113
    %372 = vmatpush.msra.mxu0 %v109
    %373 = vmatpush.msra.mxu0 %v105
    %374 = vmatpush.msra.mxu0 %v101
    %375 = vmatpush.msra.mxu0 %v97
    %376 = vmatpush.msra.mxu0 %v93
    %377 = vmatpush.msra.mxu0 %v89
    %378 = vmatmul.f32.gmra.mxu0 %v82
    %v379 = vpop.f32.mrf.mxu0
    %v380 = vadd.f32 %v219, %v379
    %381 = vmatmul.f32.gmra.mxu0 %v84
    %v382 = vpop.f32.mrf.mxu0
    %v383 = vadd.f32 %v219, %v382
    %384 = vdwg.mxu0
    %385 = vmatpush.msra.mxu0 %v213
    %386 = vmatpush.msra.mxu0 %v209
    %387 = vmatpush.msra.mxu0 %v205
    %388 = vmatpush.msra.mxu0 %v201
    %389 = vmatpush.msra.mxu0 %v197
    %390 = vmatpush.msra.mxu0 %v193
    %391 = vmatpush.msra.mxu0 %v189
    %392 = vmatpush.msra.mxu0 %v185
    %393 = vmatpush.msra.mxu0 %v181
    %394 = vmatpush.msra.mxu0 %v177
    %395 = vmatpush.msra.mxu0 %v173
    %396 = vmatpush.msra.mxu0 %v169
    %397 = vmatpush.msra.mxu0 %v165
    %398 = vmatpush.msra.mxu0 %v161
    %399 = vmatpush.msra.mxu0 %v157
    %400 = vmatpush.msra.mxu0 %v153
    %401 = vmatmul.f32.gmra.mxu0 %v83
    %v402 = vpop.f32.mrf.mxu0
    %v403 = vadd.f32 %v380, %v402
    %404 = vmatmul.f32.gmra.mxu0 %v85
    %v405 = vpop.f32.mrf.mxu0
    %v406 = vadd.f32 %v383, %v405
    %407 = vdwg.mxu0
    %v408 = vmul.f32 %v357, 0.5
    %v409 = vmul.f32 %v403, 0.5
    %v410 = vmul.f32 %v360, 0.5
    %v411 = vmul.f32 %v406, 0.5
    %v412 = vmul.f32 %v357, 0.70710677
    %v413 = vmul.f32 %v403, 0.70710677
    %v414 = vmul.f32 %v360, 0.70710677
    %v415 = vmul.f32 %v406, 0.70710677
    %v416 = vmul.f32 %v412, %v412
    %v417 = vmin.f32 16.0, %v416
    %v418 = vmul.f32 %v417, 2.1237322e-06
    %v419 = vadd.f32 %v418, 0.00028619796
    %v420 = vmul.f32 %v417, %v419
    %v421 = vadd.f32 %v420, 0.0036580483
    %v422 = vmul.f32 %v417, %v421
    %v423 = vadd.f32 %v422, 0.05243302
    %v424 = vmul.f32 %v417, %v423
    %v425 = vadd.f32 %v424, 0.18741608
    %v426 = vmul.f32 %v417, %v425
    %v427 = vadd.f32 %v426, 1.1283791
    %v428 = vmul.f32 %v412, %v427
    %v429 = vmul.f32 %v417, 3.8918573e-05
    %v430 = vadd.f32 %v429, 0.001143296
    %v431 = vmul.f32 %v417, %v430
    %v432 = vadd.f32 %v431, 0.014752088
    %v433 = vmul.f32 %v417, %v432
    %v434 = vadd.f32 %v433, 0.112945676
    %v435 = vmul.f32 %v417, %v434
    %v436 = vadd.f32 %v435, 0.4994258
    %v437 = vmul.f32 %v417, %v436
    %v438 = vadd.f32 %v437, 1.0
    %v439 = vrcp.pop %v438
    %v440 = vmul.f32 %v438, %v439
    %v441 = vsub.f32 1.0, %v440
    %v442 = vmul.f32 %v439, %v441
    %v443 = vadd.f32 %v439, %v442
    %vm444 = vweird.f32 %v438
    %vm445 = vweird.f32 %v439
    %vm446 = vmor %vm444, %vm445
    %v447 = vsel %vm446, %v439, %v443
    %v448 = vand.u32 2147483647, %v438
    %vm449 = vcmp.eq.f32.partialorder %v448, 8.507059e+37
    %v450 = vand.u32 %v438, 2147483648
    %v451 = vor.u32 1.1754944e-38, %v450
    %v452 = vsel %vm449, %v451, %v447
    %v453 = vmul.f32 %v428, %v452
    %v454 = vmin.f32 %v453, 1.0
    %v455 = vmax.f32 %v454, -1.0
    %v456 = vmul.f32 %v413, %v413
    %v457 = vmin.f32 16.0, %v456
    %v458 = vmul.f32 %v457, 2.1237322e-06
    %v459 = vadd.f32 %v458, 0.00028619796
    %v460 = vmul.f32 %v457, %v459
    %v461 = vadd.f32 %v460, 0.0036580483
    %v462 = vmul.f32 %v457, %v461
    %v463 = vadd.f32 %v462, 0.05243302
    %v464 = vmul.f32 %v457, %v463
    %v465 = vadd.f32 %v464, 0.18741608
    %v466 = vmul.f32 %v457, %v465
    %v467 = vadd.f32 %v466, 1.1283791
    %v468 = vmul.f32 %v413, %v467
    %v469 = vmul.f32 %v457, 3.8918573e-05
    %v470 = vadd.f32 %v469, 0.001143296
    %v471 = vmul.f32 %v457, %v470
    %v472 = vadd.f32 %v471, 0.014752088
    %v473 = vmul.f32 %v457, %v472
    %v474 = vadd.f32 %v473, 0.112945676
    %v475 = vmul.f32 %v457, %v474
    %v476 = vadd.f32 %v475, 0.4994258
    %v477 = vmul.f32 %v457, %v476
    %v478 = vadd.f32 %v477, 1.0
    %v479 = vrcp.pop %v478
    %v480 = vmul.f32 %v478, %v479
    %v481 = vsub.f32 1.0, %v480
    %v482 = vmul.f32 %v479, %v481
    %v483 = vadd.f32 %v479, %v482
    %vm484 = vweird.f32 %v478
    %vm485 = vweird.f32 %v479
    %vm486 = vmor %vm484, %vm485
    %v487 = vsel %vm486, %v479, %v483
    %v488 = vand.u32 2147483647, %v478
    %vm489 = vcmp.eq.f32.partialorder %v488, 8.507059e+37
    %v490 = vand.u32 %v478, 2147483648
    %v491 = vor.u32 1.1754944e-38, %v490
    %v492 = vsel %vm489, %v491, %v487
    %v493 = vmul.f32 %v468, %v492
    %v494 = vmin.f32 %v493, 1.0
    %v495 = vmax.f32 %v494, -1.0
    %v496 = vmul.f32 %v414, %v414
    %v497 = vmin.f32 16.0, %v496
    %v498 = vmul.f32 %v497, 2.1237322e-06
    %v499 = vadd.f32 %v498, 0.00028619796
    %v500 = vmul.f32 %v497, %v499
    %v501 = vadd.f32 %v500, 0.0036580483
    %v502 = vmul.f32 %v497, %v501
    %v503 = vadd.f32 %v502, 0.05243302
    %v504 = vmul.f32 %v497, %v503
    %v505 = vadd.f32 %v504, 0.18741608
    %v506 = vmul.f32 %v497, %v505
    %v507 = vadd.f32 %v506, 1.1283791
    %v508 = vmul.f32 %v414, %v507
    %v509 = vmul.f32 %v497, 3.8918573e-05
    %v510 = vadd.f32 %v509, 0.001143296
    %v511 = vmul.f32 %v497, %v510
    %v512 = vadd.f32 %v511, 0.014752088
    %v513 = vmul.f32 %v497, %v512
    %v514 = vadd.f32 %v513, 0.112945676
    %v515 = vmul.f32 %v497, %v514
    %v516 = vadd.f32 %v515, 0.4994258
    %v517 = vmul.f32 %v497, %v516
    %v518 = vadd.f32 %v517, 1.0
    %v519 = vrcp.pop %v518
    %v520 = vmul.f32 %v518, %v519
    %v521 = vsub.f32 1.0, %v520
    %v522 = vmul.f32 %v519, %v521
    %v523 = vadd.f32 %v519, %v522
    %vm524 = vweird.f32 %v518
    %vm525 = vweird.f32 %v519
    %vm526 = vmor %vm524, %vm525
    %v527 = vsel %vm526, %v519, %v523
    %v528 = vand.u32 2147483647, %v518
    %vm529 = vcmp.eq.f32.partialorder %v528, 8.507059e+37
    %v530 = vand.u32 %v518, 2147483648
    %v531 = vor.u32 1.1754944e-38, %v530
    %v532 = vsel %vm529, %v531, %v527
    %v533 = vmul.f32 %v508, %v532
    %v534 = vmin.f32 %v533, 1.0
    %v535 = vmax.f32 %v534, -1.0
    %v536 = vmul.f32 %v415, %v415
    %v537 = vmin.f32 16.0, %v536
    %v538 = vmul.f32 %v537, 2.1237322e-06
    %v539 = vadd.f32 %v538, 0.00028619796
    %v540 = vmul.f32 %v537, %v539
    %v541 = vadd.f32 %v540, 0.0036580483
    %v542 = vmul.f32 %v537, %v541
    %v543 = vadd.f32 %v542, 0.05243302
    %v544 = vmul.f32 %v537, %v543
    %v545 = vadd.f32 %v544, 0.18741608
    %v546 = vmul.f32 %v537, %v545
    %v547 = vadd.f32 %v546, 1.1283791
    %v548 = vmul.f32 %v415, %v547
    %v549 = vmul.f32 %v537, 3.8918573e-05
    %v550 = vadd.f32 %v549, 0.001143296
    %v551 = vmul.f32 %v537, %v550
    %v552 = vadd.f32 %v551, 0.014752088
    %v553 = vmul.f32 %v537, %v552
    %v554 = vadd.f32 %v553, 0.112945676
    %v555 = vmul.f32 %v537, %v554
    %v556 = vadd.f32 %v555, 0.4994258
    %v557 = vmul.f32 %v537, %v556
    %v558 = vadd.f32 %v557, 1.0
    %v559 = vrcp.pop %v558
    %v560 = vmul.f32 %v558, %v559
    %v561 = vsub.f32 1.0, %v560
    %v562 = vmul.f32 %v559, %v561
    %v563 = vadd.f32 %v559, %v562
    %vm564 = vweird.f32 %v558
    %vm565 = vweird.f32 %v559
    %vm566 = vmor %vm564, %vm565
    %v567 = vsel %vm566, %v559, %v563
    %v568 = vand.u32 2147483647, %v558
    %vm569 = vcmp.eq.f32.partialorder %v568, 8.507059e+37
    %v570 = vand.u32 %v558, 2147483648
    %v571 = vor.u32 1.1754944e-38, %v570
    %v572 = vsel %vm569, %v571, %v567
    %v573 = vmul.f32 %v548, %v572
    %v574 = vmin.f32 %v573, 1.0
    %v575 = vmax.f32 %v574, -1.0
    %v576 = vadd.f32 %v455, 1.0
    %v577 = vadd.f32 %v495, 1.0
    %v578 = vadd.f32 %v535, 1.0
    %v579 = vadd.f32 %v575, 1.0
    %v580 = vmul.f32 %v408, %v576
    %v581 = vmul.f32 %v409, %v577
    %v582 = vmul.f32 %v410, %v578
    %v583 = vmul.f32 %v411, %v579
    %v584 = vmul.f32 %v265, %v580
    %v585 = vmul.f32 %v311, %v581
    %v586 = vmul.f32 %v268, %v582
    %v587 = vmul.f32 %v314, %v583
    %v588 = vld [vmem:[#allocation8] sm:$0xff]
    %v589 = vld [vmem:[#allocation8 + $0x8] sm:$0xff]
    %v590 = vld [vmem:[#allocation8 + $0x10] sm:$0xff]
    %v591 = vld [vmem:[#allocation8 + $0x18] sm:$0xff]
    %v592 = vld [vmem:[#allocation8 + $0x20] sm:$0xff]
    %v593 = vld [vmem:[#allocation8 + $0x28] sm:$0xff]
    %v594 = vld [vmem:[#allocation8 + $0x30] sm:$0xff]
    %v595 = vld [vmem:[#allocation8 + $0x38] sm:$0xff]
    %v596 = vld [vmem:[#allocation8 + $0x40] sm:$0xff]
    %v597 = vld [vmem:[#allocation8 + $0x48] sm:$0xff]
    %v598 = vld [vmem:[#allocation8 + $0x50] sm:$0xff]
    %v599 = vld [vmem:[#allocation8 + $0x58] sm:$0xff]
    %v600 = vld [vmem:[#allocation8 + $0x60] sm:$0xff]
    %v601 = vld [vmem:[#allocation8 + $0x68] sm:$0xff]
    %v602 = vld [vmem:[#allocation8 + $0x70] sm:$0xff]
    %v603 = vld [vmem:[#allocation8 + $0x78] sm:$0xff]
    %v604 = vld [vmem:[#allocation8 + $0x80] sm:$0xff]
    %v605 = vld [vmem:[#allocation8 + $0x88] sm:$0xff]
    %v606 = vld [vmem:[#allocation8 + $0x90] sm:$0xff]
    %v607 = vld [vmem:[#allocation8 + $0x98] sm:$0xff]
    %v608 = vld [vmem:[#allocation8 + $0xa0] sm:$0xff]
    %v609 = vld [vmem:[#allocation8 + $0xa8] sm:$0xff]
    %v610 = vld [vmem:[#allocation8 + $0xb0] sm:$0xff]
    %v611 = vld [vmem:[#allocation8 + $0xb8] sm:$0xff]
    %v612 = vld [vmem:[#allocation8 + $0xc0] sm:$0xff]
    %v613 = vld [vmem:[#allocation8 + $0xc8] sm:$0xff]
    %v614 = vld [vmem:[#allocation8 + $0xd0] sm:$0xff]
    %v615 = vld [vmem:[#allocation8 + $0xd8] sm:$0xff]
    %v616 = vld [vmem:[#allocation8 + $0xe0] sm:$0xff]
    %v617 = vld [vmem:[#allocation8 + $0xe8] sm:$0xff]
    %v618 = vld [vmem:[#allocation8 + $0xf0] sm:$0xff]
    %v619 = vld [vmem:[#allocation8 + $0xf8] sm:$0xff]
    %v620 = vld [vmem:[#allocation8 + $0x100] sm:$0xff]
    %v621 = vld [vmem:[#allocation8 + $0x108] sm:$0xff]
    %v622 = vld [vmem:[#allocation8 + $0x110] sm:$0xff]
    %v623 = vld [vmem:[#allocation8 + $0x118] sm:$0xff]
    %v624 = vld [vmem:[#allocation8 + $0x120] sm:$0xff]
    %v625 = vld [vmem:[#allocation8 + $0x128] sm:$0xff]
    %v626 = vld [vmem:[#allocation8 + $0x130] sm:$0xff]
    %v627 = vld [vmem:[#allocation8 + $0x138] sm:$0xff]
    %v628 = vld [vmem:[#allocation8 + $0x140] sm:$0xff]
    %v629 = vld [vmem:[#allocation8 + $0x148] sm:$0xff]
    %v630 = vld [vmem:[#allocation8 + $0x150] sm:$0xff]
    %v631 = vld [vmem:[#allocation8 + $0x158] sm:$0xff]
    %v632 = vld [vmem:[#allocation8 + $0x160] sm:$0xff]
    %v633 = vld [vmem:[#allocation8 + $0x168] sm:$0xff]
    %v634 = vld [vmem:[#allocation8 + $0x170] sm:$0xff]
    %v635 = vld [vmem:[#allocation8 + $0x178] sm:$0xff]
    %v636 = vld [vmem:[#allocation8 + $0x180] sm:$0xff]
    %v637 = vld [vmem:[#allocation8 + $0x188] sm:$0xff]
    %v638 = vld [vmem:[#allocation8 + $0x190] sm:$0xff]
    %v639 = vld [vmem:[#allocation8 + $0x198] sm:$0xff]
    %v640 = vld [vmem:[#allocation8 + $0x1a0] sm:$0xff]
    %v641 = vld [vmem:[#allocation8 + $0x1a8] sm:$0xff]
    %v642 = vld [vmem:[#allocation8 + $0x1b0] sm:$0xff]
    %v643 = vld [vmem:[#allocation8 + $0x1b8] sm:$0xff]
    %v644 = vld [vmem:[#allocation8 + $0x1c0] sm:$0xff]
    %v645 = vld [vmem:[#allocation8 + $0x1c8] sm:$0xff]
    %v646 = vld [vmem:[#allocation8 + $0x1d0] sm:$0xff]
    %v647 = vld [vmem:[#allocation8 + $0x1d8] sm:$0xff]
    %v648 = vld [vmem:[#allocation8 + $0x1e0] sm:$0xff]
    %v649 = vld [vmem:[#allocation8 + $0x1e8] sm:$0xff]
    %v650 = vld [vmem:[#allocation8 + $0x1f0] sm:$0xff]
    %v651 = vld [vmem:[#allocation8 + $0x1f8] sm:$0xff]
    %v652 = vld [vmem:[%s4] sm:$0x3]
    %v654 = vperm.slane %v652, 0
    %v655 = vperm.slane %v652, 1
    %658 = vmatpush.msra.mxu0 %v618
    %659 = vmatpush.msra.mxu0 %v616
    %660 = vmatpush.msra.mxu0 %v614
    %661 = vmatpush.msra.mxu0 %v612
    %662 = vmatpush.msra.mxu0 %v610
    %663 = vmatpush.msra.mxu0 %v608
    %664 = vmatpush.msra.mxu0 %v606
    %665 = vmatpush.msra.mxu0 %v604
    %666 = vmatpush.msra.mxu0 %v602
    %667 = vmatpush.msra.mxu0 %v600
    %668 = vmatpush.msra.mxu0 %v598
    %669 = vmatpush.msra.mxu0 %v596
    %670 = vmatpush.msra.mxu0 %v594
    %671 = vmatpush.msra.mxu0 %v592
    %672 = vmatpush.msra.mxu0 %v590
    %673 = vmatpush.msra.mxu0 %v588
    %674 = vmatmul.f32.gmra.mxu0 %v584
    %v675 = vpop.f32.mrf.mxu0
    %v676 = vadd.f32 %v654, %v675
    %677 = vmatmul.f32.gmra.mxu0 %v586
    %v678 = vpop.f32.mrf.mxu0
    %v679 = vadd.f32 %v654, %v678
    %680 = vdwg.mxu0
    %681 = vmatpush.msra.mxu0 %v650
    %682 = vmatpush.msra.mxu0 %v648
    %683 = vmatpush.msra.mxu0 %v646
    %684 = vmatpush.msra.mxu0 %v644
    %685 = vmatpush.msra.mxu0 %v642
    %686 = vmatpush.msra.mxu0 %v640
    %687 = vmatpush.msra.mxu0 %v638
    %688 = vmatpush.msra.mxu0 %v636
    %689 = vmatpush.msra.mxu0 %v634
    %690 = vmatpush.msra.mxu0 %v632
    %691 = vmatpush.msra.mxu0 %v630
    %692 = vmatpush.msra.mxu0 %v628
    %693 = vmatpush.msra.mxu0 %v626
    %694 = vmatpush.msra.mxu0 %v624
    %695 = vmatpush.msra.mxu0 %v622
    %696 = vmatpush.msra.mxu0 %v620
    %697 = vmatmul.f32.gmra.mxu0 %v585
    %v698 = vpop.f32.mrf.mxu0
    %v699 = vadd.f32 %v676, %v698
    %700 = vmatmul.f32.gmra.mxu0 %v587
    %v701 = vpop.f32.mrf.mxu0
    %v702 = vadd.f32 %v679, %v701
    %703 = vdwg.mxu0
    %704 = vmatpush.msra.mxu0 %v619
    %705 = vmatpush.msra.mxu0 %v617
    %706 = vmatpush.msra.mxu0 %v615
    %707 = vmatpush.msra.mxu0 %v613
    %708 = vmatpush.msra.mxu0 %v611
    %709 = vmatpush.msra.mxu0 %v609
    %710 = vmatpush.msra.mxu0 %v607
    %711 = vmatpush.msra.mxu0 %v605
    %712 = vmatpush.msra.mxu0 %v603
    %713 = vmatpush.msra.mxu0 %v601
    %714 = vmatpush.msra.mxu0 %v599
    %715 = vmatpush.msra.mxu0 %v597
    %716 = vmatpush.msra.mxu0 %v595
    %717 = vmatpush.msra.mxu0 %v593
    %718 = vmatpush.msra.mxu0 %v591
    %719 = vmatpush.msra.mxu0 %v589
    %720 = vmatmul.f32.gmra.mxu0 %v584
    %v721 = vpop.f32.mrf.mxu0
    %v722 = vadd.f32 %v655, %v721
    %723 = vmatmul.f32.gmra.mxu0 %v586
    %v724 = vpop.f32.mrf.mxu0
    %v725 = vadd.f32 %v655, %v724
    %726 = vdwg.mxu0
    %727 = vmatpush.msra.mxu0 %v651
    %728 = vmatpush.msra.mxu0 %v649
    %729 = vmatpush.msra.mxu0 %v647
    %730 = vmatpush.msra.mxu0 %v645
    %731 = vmatpush.msra.mxu0 %v643
    %732 = vmatpush.msra.mxu0 %v641
    %733 = vmatpush.msra.mxu0 %v639
    %734 = vmatpush.msra.mxu0 %v637
    %735 = vmatpush.msra.mxu0 %v635
    %736 = vmatpush.msra.mxu0 %v633
    %737 = vmatpush.msra.mxu0 %v631
    %738 = vmatpush.msra.mxu0 %v629
    %739 = vmatpush.msra.mxu0 %v627
    %740 = vmatpush.msra.mxu0 %v625
    %741 = vmatpush.msra.mxu0 %v623
    %742 = vmatpush.msra.mxu0 %v621
    %743 = vmatmul.f32.gmra.mxu0 %v585
    %v744 = vpop.f32.mrf.mxu0
    %v745 = vadd.f32 %v722, %v744
    %746 = vmatmul.f32.gmra.mxu0 %v587
    %v747 = vpop.f32.mrf.mxu0
    %v748 = vadd.f32 %v725, %v747
    %749 = vdwg.mxu0
    %750 = vst [vmem:[#allocation10] sm:$0xff] %v699
    %751 = vst [vmem:[#allocation10 + $0x8] sm:$0xff] %v745
    %752 = vst [vmem:[#allocation10 + $0x10] sm:$0xff] %v702
    %753 = vst [vmem:[#allocation10 + $0x18] sm:$0xff] %v748
    // Predicated region
    $region38: #{tpu_custom_call.1} parent=1 // pred_check
      _
    $region39: #{tpu_custom_call.1} parent=1 // pred_check_branch
      %755 = sbr.rel (0) target = $region41
    $region40: #{tpu_custom_call.1} parent=1 // pred_region
      %757 = vsyncadd [#allocation4], 0
      %s758 = sshll.u32 [#allocation10], 4
      %s759 = int_to_ptr.vmem [resolvable:$true] %s758
      %s760 = sshll.u32 %s5, 4
      %s761 = int_to_ptr.hbm [resolvable:$true] %s760
      %766 = dma.vmem_to_hbm [thread:$0]  %s759, 512, %s761, [#allocation4], 256, 256, 16
    $region41: #{tpu_custom_call.1} parent=1 // pred_fallthru
      _
    // Predicated region
    $region42: #{tpu_custom_call.1} parent=1 // pred_check
      _
    $region43: #{tpu_custom_call.1} parent=1 // pred_check_branch
      %768 = sbr.rel (0) target = $region45
    $region44: #{tpu_custom_call.1} parent=1 // pred_region
      %770 = dma.done [#allocation4], 512
    $region45: #{tpu_custom_call.1} parent=1 // pred_fallthru
      _
    %771 = vsyncpa [#allocation3], 1
    %772 = vsyncpa [#allocation6], 1
    %773 = vsyncpa [#allocation9], 1
    %774 = vsyncpa [#allocation4], 1

</llo_original>
